<compile_context>
chip_gen: v5e
topology: v5e:2x2
jax: 0.10.0
libtpu: 0.0.40
codegen_flags: <defaults>
</compile_context>

<pallas_src>
import functools

import jax
import jax.numpy as jnp
import numpy as np
from jax.experimental import pallas as pl
from jax.experimental.pallas import tpu as pltpu

# ----------------------------- hyper-params ---------------------------------
OHLCV_SIZE = 5                      # lstm_input_dim (I)
LSTM_HIDDEN = 8                     # lstm_hidden_dim (H)
ACTOR_DIM = 64
CRITIC_DIM = 64
SEQ_LEN = 8                         # T = feature_dim / ohlcv_size
FEATURE_DIM = SEQ_LEN * OHLCV_SIZE  # 40
BATCH = 2

TWO_H = 2 * LSTM_HIDDEN             # 16  fused state [h_fwd | h_bwd]
GATES = 4 * TWO_H                   # 64  gate cols [i_f,i_b,f_f,f_b,g_f,g_b,o_f,o_b]
T_GATES = SEQ_LEN * GATES           # 512 all-timestep gate columns
HSEQ = SEQ_LEN * TWO_H              # 128 head matmul K
OUT_DIM = ACTOR_DIM + CRITIC_DIM    # 128 fused lane-dense pi|vf output


# ------------------------------- kernel -------------------------------------
def seq_bid_lstm_kernel(x_ref, win_ref, whh_ref, head_ref, out_ref, hseq_ref):
    # x_ref:    (TB, 40)     raw features, batch-major
    # win_ref:  (41, 512)    big input-projection weight (time pairing folded in) + bias row
    # whh_ref:  (16, 64)     block-diagonal fused recurrent weight
    # head_ref: (129, 128)   fused pi|vf head weight + bias row
    # out_ref:  (TB, 128)
    # hseq_ref: (TB, 128)    VMEM scratch accumulating [h_fwd(t=s) | h_bwd(t=T-1-s)] per step
    tb = x_ref.shape[0]

    w_in = win_ref[0:FEATURE_DIM, :]                     # (40, 512)
    b_in = win_ref[FEATURE_DIM:FEATURE_DIM + 1, :]       # (1, 512)
    # ONE matmul: every input-gate contribution, both directions, all timesteps,
    # time-reversal + bias folded in.  Entirely off the serial chain.
    xg = jnp.dot(x_ref[...], w_in, preferred_element_type=jnp.float32) + b_in   # (TB, 512)
    # Per-step gate slices (no dependence on h -> precomputed off the chain).
    xg_steps = [xg[:, s * GATES:(s + 1) * GATES] for s in range(SEQ_LEN)]

    w_hh = whh_ref[...]                                  # (16, 64)
    h = jnp.zeros((tb, TWO_H), jnp.float32)              # [h_fwd | h_bwd]
    c = jnp.zeros((tb, TWO_H), jnp.float32)

    # TODO(synk): hold w_hh resident in the MXU (pltpu.matmul_push_rhs /
    # matmul_acc_lhs / matmul_pop) to drop per-step RHS staging from the chain.
    for s in range(SEQ_LEN):                             # fully unrolled, T = 8
        gates = xg_steps[s] + jnp.dot(h, w_hh, preferred_element_type=jnp.float32)
        # i/f/o columns were pre-scaled by 0.5 at pack time, so a single tanh
        # gives sigmoid(z) = 0.5*tanh(z/2) + 0.5 exactly (one EUP pass/step).
        t = jnp.tanh(gates)                              # (TB, 64)
        i_g = 0.5 * t[:, 0 * TWO_H:1 * TWO_H] + 0.5
        f_g = 0.5 * t[:, 1 * TWO_H:2 * TWO_H] + 0.5
        g_g = t[:, 2 * TWO_H:3 * TWO_H]
        o_g = 0.5 * t[:, 3 * TWO_H:4 * TWO_H] + 0.5
        c = f_g * c + i_g * g_g
        h = o_g * jnp.tanh(c)
        hseq_ref[:, s * TWO_H:(s + 1) * TWO_H] = h       # lane offset 16*s

    # One K=128, lane-dense MXU pass produces both heads at once.
    w_head = head_ref[0:HSEQ, :]                         # (128, 128)
    b_head = head_ref[HSEQ:HSEQ + 1, :]                  # (1, 128)
    out_ref[...] = jnp.tanh(
        jnp.dot(hseq_ref[...], w_head, preferred_element_type=jnp.float32) + b_head)


# ------------------------------ wrapper --------------------------------------
@functools.partial(jax.jit, static_argnames=("tile_b",))
def seq_bid_lstm_forward(features, win_slab, whh_slab, head_slab, *, tile_b=128):
    """features: (B, 40) -> (latent_pi (B,64), latent_vf (B,64))."""
    B = features.shape[0]
    # Full 128-row tiles for large RL batches; smallest 8-aligned tile otherwise.
    tb = tile_b if B >= tile_b else max(8, ((B + 7) // 8) * 8)
    n_tiles = (B + tb - 1) // tb
    bp = n_tiles * tb
    x = features.astype(jnp.float32)
    if bp != B:
        x = jnp.pad(x, ((0, bp - B), (0, 0)))

    out = pl.pallas_call(
        seq_bid_lstm_kernel,
        out_shape=jax.ShapeDtypeStruct((bp, OUT_DIM), jnp.float32),
        grid_spec=pltpu.PrefetchScalarGridSpec(
            num_scalar_prefetch=0,
            grid=(n_tiles,),
            in_specs=[
                pl.BlockSpec((tb, FEATURE_DIM), lambda i: (i, 0)),           # batch tile
                pl.BlockSpec((FEATURE_DIM + 1, T_GATES), lambda i: (0, 0)),  # resident
                pl.BlockSpec((TWO_H, GATES), lambda i: (0, 0)),              # resident
                pl.BlockSpec((HSEQ + 1, OUT_DIM), lambda i: (0, 0)),         # resident
            ],
            out_specs=pl.BlockSpec((tb, OUT_DIM), lambda i: (i, 0)),
            scratch_shapes=[pltpu.VMEM((tb, HSEQ), jnp.float32)],
        ),
        compiler_params=pltpu.CompilerParams(
            dimension_semantics=("parallel",)),  # 2-TC sharding on v7x; harmless elsewhere
    )(x, win_slab, whh_slab, head_slab)
    # TODO(synk): for v6e/v7x large-batch rollouts, store win_slab/head_slab in
    # bf16 (keep h/c/gates f32) for ~2x MXU throughput; loosen test rtol to 1e-2.
    return out[:B, :ACTOR_DIM], out[:B, ACTOR_DIM:]


# --------------------------- deterministic init ------------------------------
def init_params(key):
    """Raw parameters in PyTorch layout (gate order [i, f, g, o])."""
    H, I = LSTM_HIDDEN, OHLCV_SIZE
    ks = jax.random.split(key, 12)
    u = lambda k, shape, scale: jax.random.uniform(
        k, shape, jnp.float32, minval=-scale, maxval=scale)

    s_lstm = 1.0 / np.sqrt(H)
    raw = {
        "w_ih_f": u(ks[0], (4 * H, I), s_lstm), "w_hh_f": u(ks[1], (4 * H, H), s_lstm),
        "b_ih_f": u(ks[2], (4 * H,), s_lstm),   "b_hh_f": u(ks[3], (4 * H,), s_lstm),
        "w_ih_b": u(ks[4], (4 * H, I), s_lstm), "w_hh_b": u(ks[5], (4 * H, H), s_lstm),
        "b_ih_b": u(ks[6], (4 * H,), s_lstm),   "b_hh_b": u(ks[7], (4 * H,), s_lstm),
    }
    in_dim = 2 * H * SEQ_LEN
    s_head = 1.0 / np.sqrt(in_dim)
    raw.update({
        "w_pi": u(ks[8], (ACTOR_DIM, in_dim), s_head),  "b_pi": u(ks[9], (ACTOR_DIM,), s_head),
        "w_vf": u(ks[10], (CRITIC_DIM, in_dim), s_head), "b_vf": u(ks[11], (CRITIC_DIM,), s_head),
    })
    return raw


def _interleave_gates(fwd, bwd, H):
    """(R,4H) fwd + (R,4H) bwd -> (R,8H) cols [i_f,i_b,f_f,f_b,g_f,g_b,o_f,o_b]."""
    R = fwd.shape[0]
    f4 = fwd.reshape(R, 4, H)
    b4 = bwd.reshape(R, 4, H)
    return jnp.stack([f4, b4], axis=2).reshape(R, 8 * H)


def pack_params(raw):
    """Repack PyTorch-layout params into the three kernel slabs."""
    H, I, T = LSTM_HIDDEN, OHLCV_SIZE, SEQ_LEN
    z_i = jnp.zeros((I, 4 * H), jnp.float32)
    z_h = jnp.zeros((H, 4 * H), jnp.float32)

    w_in_f = _interleave_gates(raw["w_ih_f"].T, z_i, H)      # (I, 8H) fwd gate cols
    w_in_b = _interleave_gates(z_i, raw["w_ih_b"].T, H)      # (I, 8H) bwd gate cols
    w_hh = jnp.concatenate([
        _interleave_gates(raw["w_hh_f"].T, z_h, H),
        _interleave_gates(z_h, raw["w_hh_b"].T, H),
    ], axis=0)                                               # (2H, 8H) block-diagonal
    b64 = _interleave_gates((raw["b_ih_f"] + raw["b_hh_f"])[None, :],
                            (raw["b_ih_b"] + raw["b_hh_b"])[None, :], H)  # (1, 8H)

    # Pre-scale i/f/o gate columns by 0.5 so one tanh covers sigmoid (0.5*t+0.5).
    scale = np.ones((GATES,), np.float32)
    scale[0:2 * TWO_H] = 0.5          # i, f
    scale[3 * TWO_H:4 * TWO_H] = 0.5  # o
    scale = jnp.asarray(scale)[None, :]
    w_in_f = w_in_f * scale
    w_in_b = w_in_b * scale
    w_hh = w_hh * scale
    b64 = b64 * scale

    # Big input-projection matrix: column block s (64 cols) mixes x[t=s] through
    # the forward weights and x[t=T-1-s] through the backward weights, folding
    # the bidirectional time pairing into one (40, 512) matmul.
    w_big = jnp.zeros((T * I, T_GATES), jnp.float32)
    for s in range(T):
        w_big = w_big.at[s * I:(s + 1) * I, s * GATES:(s + 1) * GATES].add(w_in_f)
        w_big = w_big.at[(T - 1 - s) * I:(T - s) * I, s * GATES:(s + 1) * GATES].add(w_in_b)
    b_big = jnp.tile(b64, (1, T))                            # (1, 512)
    win_slab = jnp.concatenate([w_big, b_big], axis=0)       # (41, 512)

    # Head: kernel h_seq column block s = [h_fwd(t=s) | h_bwd(t=T-1-s)];
    # PyTorch flat h_seq column for (t, dir, j) is t*2H + dir*H + j.
    perm = []
    for s in range(T):
        perm += list(range(s * 2 * H, s * 2 * H + H))                              # fwd, t=s
        perm += list(range((T - 1 - s) * 2 * H + H, (T - 1 - s) * 2 * H + 2 * H))  # bwd, t=T-1-s
    perm = np.asarray(perm)

    w_head_pt = jnp.concatenate([raw["w_pi"], raw["w_vf"]], axis=0)   # (A+C, T*2H)
    w_head = w_head_pt[:, perm].T                                     # (T*2H, A+C)
    b_head = jnp.concatenate([raw["b_pi"], raw["b_vf"]])[None, :]     # (1, A+C)
    head_slab = jnp.concatenate([w_head, b_head], axis=0)             # (129, 128)
    return win_slab, w_hh, head_slab


# ---------------------------- pure-JAX reference -----------------------------
def reference_forward(features, raw):
    B = features.shape[0]
    H = LSTM_HIDDEN
    x = features.reshape(B, SEQ_LEN, OHLCV_SIZE).astype(jnp.float32)

    def run_dir(w_ih, w_hh, b_ih, b_hh, reverse):
        wih, whh, b = w_ih.T, w_hh.T, b_ih + b_hh
        h = jnp.zeros((B, H), jnp.float32)
        c = jnp.zeros((B, H), jnp.float32)
        outs = [None] * SEQ_LEN
        order = range(SEQ_LEN - 1, -1, -1) if reverse else range(SEQ_LEN)
        for t in order:
            g = x[:, t, :] @ wih + h @ whh + b
            i_g = jax.nn.sigmoid(g[:, 0 * H:1 * H])
            f_g = jax.nn.sigmoid(g[:, 1 * H:2 * H])
            g_g = jnp.tanh(g[:, 2 * H:3 * H])
            o_g = jax.nn.sigmoid(g[:, 3 * H:4 * H])
            c = f_g * c + i_g * g_g
            h = o_g * jnp.tanh(c)
            outs[t] = h
        return jnp.stack(outs, axis=1)                  # (B, T, H)

    hf = run_dir(raw["w_ih_f"], raw["w_hh_f"], raw["b_ih_f"], raw["b_hh_f"], False)
    hb = run_dir(raw["w_ih_b"], raw["w_hh_b"], raw["b_ih_b"], raw["b_hh_b"], True)
    h_seq = jnp.concatenate([hf, hb], axis=-1).reshape(B, -1)    # (B, T*2H)
    pi = jnp.tanh(h_seq @ raw["w_pi"].T + raw["b_pi"])
    vf = jnp.tanh(h_seq @ raw["w_vf"].T + raw["b_vf"])
    return pi, vf


# --------------------------------- main ---------------------------------------
if __name__ == "__main__":
    key = jax.random.PRNGKey(0)
    k_param, k_feat = jax.random.split(key)
    raw = init_params(k_param)
    win_slab, whh_slab, head_slab = pack_params(raw)

    # Primary small-shape check (B = 2, as in the module spec).
    features = jax.random.normal(k_feat, (BATCH, FEATURE_DIM), jnp.float32)
    latent_pi, latent_vf = seq_bid_lstm_forward(features, win_slab, whh_slab, head_slab)
    jax.block_until_ready((latent_pi, latent_vf))

    ref_pi, ref_vf = reference_forward(features, raw)
    np.testing.assert_allclose(np.asarray(latent_pi), np.asarray(ref_pi),
                               rtol=1e-5, atol=1e-5)
    np.testing.assert_allclose(np.asarray(latent_vf), np.asarray(ref_vf),
                               rtol=1e-5, atol=1e-5)
    assert latent_pi.shape == (BATCH, ACTOR_DIM)
    assert latent_vf.shape == (BATCH, CRITIC_DIM)

    # Batched-path check: exercises batch padding + a 2-tile parallel batch grid.
    B2 = 130
    features2 = jax.random.normal(jax.random.PRNGKey(1), (B2, FEATURE_DIM), jnp.float32)
    pi2, vf2 = seq_bid_lstm_forward(features2, win_slab, whh_slab, head_slab)
    jax.block_until_ready((pi2, vf2))
    ref_pi2, ref_vf2 = reference_forward(features2, raw)
    np.testing.assert_allclose(np.asarray(pi2), np.asarray(ref_pi2), rtol=1e-5, atol=1e-5)
    np.testing.assert_allclose(np.asarray(vf2), np.asarray(ref_vf2), rtol=1e-5, atol=1e-5)

    print("KERNEL_OK")
</pallas_src>

<mosaic_0001>
module attributes {stable_mosaic.version = 11 : i64} {
  func.func @seq_bid_lstm_kernel(%arg0: i32, %arg1: memref<8x40xf32, #tpu.memory_space<vmem>>, %arg2: memref<41x512xf32, #tpu.memory_space<vmem>>, %arg3: memref<16x64xf32, #tpu.memory_space<vmem>>, %arg4: memref<129x128xf32, #tpu.memory_space<vmem>>, %arg5: memref<8x128xf32, #tpu.memory_space<vmem>>, %arg6: memref<8x128xf32, #tpu.memory_space<vmem>>) attributes {dimension_semantics = [#tpu.dimension_semantics<parallel>], iteration_bounds = array<i64: 1>, scalar_prefetch = 0 : i64, scratch_operands = 1 : i64, tpu.core_type = #tpu.core_type<tc>, window_params = [{transform_indices = @transform_0, window_bounds = array<i64: 8, 40>}, {pipeline_mode = #tpu.pipeline_mode<synchronous>, transform_indices = @transform_1, window_bounds = array<i64: 41, 512>}, {pipeline_mode = #tpu.pipeline_mode<synchronous>, transform_indices = @transform_2, window_bounds = array<i64: 16, 64>}, {pipeline_mode = #tpu.pipeline_mode<synchronous>, transform_indices = @transform_3, window_bounds = array<i64: 129, 128>}, {transform_indices = @transform_4, window_bounds = array<i64: 8, 128>}]} {
    %c0 = arith.constant 0 : index
    %c0_0 = arith.constant 0 : index
    %0 = vector.load %arg2[%c0, %c0_0] : memref<41x512xf32, #tpu.memory_space<vmem>>, vector<40x512xf32>
    %c40 = arith.constant 40 : index
    %c0_1 = arith.constant 0 : index
    %1 = vector.load %arg2[%c40, %c0_1] : memref<41x512xf32, #tpu.memory_space<vmem>>, vector<1x512xf32>
    %c0_2 = arith.constant 0 : index
    %c0_3 = arith.constant 0 : index
    %2 = vector.load %arg1[%c0_2, %c0_3] : memref<8x40xf32, #tpu.memory_space<vmem>>, vector<8x40xf32>
    %cst = arith.constant dense<0.000000e+00> : vector<8x512xf32>
    %3 = tpu.matmul %2, %0, %cst {dimension_numbers = #tpu.dot_dimension_numbers<[1], [0], [0], [1], [0, 0, 1, 1], [], []>} : vector<8x40xf32>, vector<40x512xf32>, vector<8x512xf32> -> vector<8x512xf32>
    %4 = vector.broadcast %1 : vector<1x512xf32> to vector<8x512xf32>
    %5 = arith.addf %3, %4 : vector<8x512xf32>
    %6 = vector.extract_strided_slice %5 {offsets = [0, 0], sizes = [8, 64], strides = [1, 1]} : vector<8x512xf32> to vector<8x64xf32>
    %7 = vector.extract_strided_slice %5 {offsets = [0, 64], sizes = [8, 64], strides = [1, 1]} : vector<8x512xf32> to vector<8x64xf32>
    %8 = vector.extract_strided_slice %5 {offsets = [0, 128], sizes = [8, 64], strides = [1, 1]} : vector<8x512xf32> to vector<8x64xf32>
    %9 = vector.extract_strided_slice %5 {offsets = [0, 192], sizes = [8, 64], strides = [1, 1]} : vector<8x512xf32> to vector<8x64xf32>
    %10 = vector.extract_strided_slice %5 {offsets = [0, 256], sizes = [8, 64], strides = [1, 1]} : vector<8x512xf32> to vector<8x64xf32>
    %11 = vector.extract_strided_slice %5 {offsets = [0, 320], sizes = [8, 64], strides = [1, 1]} : vector<8x512xf32> to vector<8x64xf32>
    %12 = vector.extract_strided_slice %5 {offsets = [0, 384], sizes = [8, 64], strides = [1, 1]} : vector<8x512xf32> to vector<8x64xf32>
    %13 = vector.extract_strided_slice %5 {offsets = [0, 448], sizes = [8, 64], strides = [1, 1]} : vector<8x512xf32> to vector<8x64xf32>
    %c0_4 = arith.constant 0 : index
    %c0_5 = arith.constant 0 : index
    %14 = vector.load %arg3[%c0_4, %c0_5] : memref<16x64xf32, #tpu.memory_space<vmem>>, vector<16x64xf32>
    %cst_6 = arith.constant 0.000000e+00 : f32
    %15 = vector.broadcast %cst_6 : f32 to vector<8x16xf32>
    %cst_7 = arith.constant 0.000000e+00 : f32
    %16 = vector.broadcast %cst_7 : f32 to vector<8x16xf32>
    %cst_8 = arith.constant dense<0.000000e+00> : vector<8x64xf32>
    %17 = tpu.matmul %15, %14, %cst_8 {dimension_numbers = #tpu.dot_dimension_numbers<[1], [0], [0], [1], [0, 0, 1, 1], [], []>} : vector<8x16xf32>, vector<16x64xf32>, vector<8x64xf32> -> vector<8x64xf32>
    %18 = arith.addf %6, %17 : vector<8x64xf32>
    %19 = math.tanh %18 : vector<8x64xf32>
    %20 = vector.extract_strided_slice %19 {offsets = [0, 0], sizes = [8, 16], strides = [1, 1]} : vector<8x64xf32> to vector<8x16xf32>
    %cst_9 = arith.constant 5.000000e-01 : f32
    %21 = vector.broadcast %cst_9 : f32 to vector<8x16xf32>
    %22 = arith.mulf %21, %20 : vector<8x16xf32>
    %cst_10 = arith.constant 5.000000e-01 : f32
    %23 = vector.broadcast %cst_10 : f32 to vector<8x16xf32>
    %24 = arith.addf %22, %23 : vector<8x16xf32>
    %25 = vector.extract_strided_slice %19 {offsets = [0, 16], sizes = [8, 16], strides = [1, 1]} : vector<8x64xf32> to vector<8x16xf32>
    %cst_11 = arith.constant 5.000000e-01 : f32
    %26 = vector.broadcast %cst_11 : f32 to vector<8x16xf32>
    %27 = arith.mulf %26, %25 : vector<8x16xf32>
    %cst_12 = arith.constant 5.000000e-01 : f32
    %28 = vector.broadcast %cst_12 : f32 to vector<8x16xf32>
    %29 = arith.addf %27, %28 : vector<8x16xf32>
    %30 = vector.extract_strided_slice %19 {offsets = [0, 32], sizes = [8, 16], strides = [1, 1]} : vector<8x64xf32> to vector<8x16xf32>
    %31 = vector.extract_strided_slice %19 {offsets = [0, 48], sizes = [8, 16], strides = [1, 1]} : vector<8x64xf32> to vector<8x16xf32>
    %cst_13 = arith.constant 5.000000e-01 : f32
    %32 = vector.broadcast %cst_13 : f32 to vector<8x16xf32>
    %33 = arith.mulf %32, %31 : vector<8x16xf32>
    %cst_14 = arith.constant 5.000000e-01 : f32
    %34 = vector.broadcast %cst_14 : f32 to vector<8x16xf32>
    %35 = arith.addf %33, %34 : vector<8x16xf32>
    %36 = arith.mulf %29, %16 : vector<8x16xf32>
    %37 = arith.mulf %24, %30 : vector<8x16xf32>
    %38 = arith.addf %36, %37 : vector<8x16xf32>
    %39 = math.tanh %38 : vector<8x16xf32>
    %40 = arith.mulf %35, %39 : vector<8x16xf32>
    %c0_15 = arith.constant 0 : index
    %c0_16 = arith.constant 0 : index
    %41 = vector.load %arg6[%c0_15, %c0_16] : memref<8x128xf32, #tpu.memory_space<vmem>>, vector<8x16xf32>
    tpu.vector_store %arg6[%c0_15, %c0_16], %40 {strides = array<i32>} : memref<8x128xf32, #tpu.memory_space<vmem>>, vector<8x16xf32>,
    %cst_17 = arith.constant dense<0.000000e+00> : vector<8x64xf32>
    %42 = tpu.matmul %40, %14, %cst_17 {dimension_numbers = #tpu.dot_dimension_numbers<[1], [0], [0], [1], [0, 0, 1, 1], [], []>} : vector<8x16xf32>, vector<16x64xf32>, vector<8x64xf32> -> vector<8x64xf32>
    %43 = arith.addf %7, %42 : vector<8x64xf32>
    %44 = math.tanh %43 : vector<8x64xf32>
    %45 = vector.extract_strided_slice %44 {offsets = [0, 0], sizes = [8, 16], strides = [1, 1]} : vector<8x64xf32> to vector<8x16xf32>
    %cst_18 = arith.constant 5.000000e-01 : f32
    %46 = vector.broadcast %cst_18 : f32 to vector<8x16xf32>
    %47 = arith.mulf %46, %45 : vector<8x16xf32>
    %cst_19 = arith.constant 5.000000e-01 : f32
    %48 = vector.broadcast %cst_19 : f32 to vector<8x16xf32>
    %49 = arith.addf %47, %48 : vector<8x16xf32>
    %50 = vector.extract_strided_slice %44 {offsets = [0, 16], sizes = [8, 16], strides = [1, 1]} : vector<8x64xf32> to vector<8x16xf32>
    %cst_20 = arith.constant 5.000000e-01 : f32
    %51 = vector.broadcast %cst_20 : f32 to vector<8x16xf32>
    %52 = arith.mulf %51, %50 : vector<8x16xf32>
    %cst_21 = arith.constant 5.000000e-01 : f32
    %53 = vector.broadcast %cst_21 : f32 to vector<8x16xf32>
    %54 = arith.addf %52, %53 : vector<8x16xf32>
    %55 = vector.extract_strided_slice %44 {offsets = [0, 32], sizes = [8, 16], strides = [1, 1]} : vector<8x64xf32> to vector<8x16xf32>
    %56 = vector.extract_strided_slice %44 {offsets = [0, 48], sizes = [8, 16], strides = [1, 1]} : vector<8x64xf32> to vector<8x16xf32>
    %cst_22 = arith.constant 5.000000e-01 : f32
    %57 = vector.broadcast %cst_22 : f32 to vector<8x16xf32>
    %58 = arith.mulf %57, %56 : vector<8x16xf32>
    %cst_23 = arith.constant 5.000000e-01 : f32
    %59 = vector.broadcast %cst_23 : f32 to vector<8x16xf32>
    %60 = arith.addf %58, %59 : vector<8x16xf32>
    %61 = arith.mulf %54, %38 : vector<8x16xf32>
    %62 = arith.mulf %49, %55 : vector<8x16xf32>
    %63 = arith.addf %61, %62 : vector<8x16xf32>
    %64 = math.tanh %63 : vector<8x16xf32>
    %65 = arith.mulf %60, %64 : vector<8x16xf32>
    %c0_24 = arith.constant 0 : index
    %c16 = arith.constant 16 : index
    %66 = vector.load %arg6[%c0_24, %c16] : memref<8x128xf32, #tpu.memory_space<vmem>>, vector<8x16xf32>
    tpu.vector_store %arg6[%c0_24, %c16], %65 {strides = array<i32>} : memref<8x128xf32, #tpu.memory_space<vmem>>, vector<8x16xf32>,
    %cst_25 = arith.constant dense<0.000000e+00> : vector<8x64xf32>
    %67 = tpu.matmul %65, %14, %cst_25 {dimension_numbers = #tpu.dot_dimension_numbers<[1], [0], [0], [1], [0, 0, 1, 1], [], []>} : vector<8x16xf32>, vector<16x64xf32>, vector<8x64xf32> -> vector<8x64xf32>
    %68 = arith.addf %8, %67 : vector<8x64xf32>
    %69 = math.tanh %68 : vector<8x64xf32>
    %70 = vector.extract_strided_slice %69 {offsets = [0, 0], sizes = [8, 16], strides = [1, 1]} : vector<8x64xf32> to vector<8x16xf32>
    %cst_26 = arith.constant 5.000000e-01 : f32
    %71 = vector.broadcast %cst_26 : f32 to vector<8x16xf32>
    %72 = arith.mulf %71, %70 : vector<8x16xf32>
    %cst_27 = arith.constant 5.000000e-01 : f32
    %73 = vector.broadcast %cst_27 : f32 to vector<8x16xf32>
    %74 = arith.addf %72, %73 : vector<8x16xf32>
    %75 = vector.extract_strided_slice %69 {offsets = [0, 16], sizes = [8, 16], strides = [1, 1]} : vector<8x64xf32> to vector<8x16xf32>
    %cst_28 = arith.constant 5.000000e-01 : f32
    %76 = vector.broadcast %cst_28 : f32 to vector<8x16xf32>
    %77 = arith.mulf %76, %75 : vector<8x16xf32>
    %cst_29 = arith.constant 5.000000e-01 : f32
    %78 = vector.broadcast %cst_29 : f32 to vector<8x16xf32>
    %79 = arith.addf %77, %78 : vector<8x16xf32>
    %80 = vector.extract_strided_slice %69 {offsets = [0, 32], sizes = [8, 16], strides = [1, 1]} : vector<8x64xf32> to vector<8x16xf32>
    %81 = vector.extract_strided_slice %69 {offsets = [0, 48], sizes = [8, 16], strides = [1, 1]} : vector<8x64xf32> to vector<8x16xf32>
    %cst_30 = arith.constant 5.000000e-01 : f32
    %82 = vector.broadcast %cst_30 : f32 to vector<8x16xf32>
    %83 = arith.mulf %82, %81 : vector<8x16xf32>
    %cst_31 = arith.constant 5.000000e-01 : f32
    %84 = vector.broadcast %cst_31 : f32 to vector<8x16xf32>
    %85 = arith.addf %83, %84 : vector<8x16xf32>
    %86 = arith.mulf %79, %63 : vector<8x16xf32>
    %87 = arith.mulf %74, %80 : vector<8x16xf32>
    %88 = arith.addf %86, %87 : vector<8x16xf32>
    %89 = math.tanh %88 : vector<8x16xf32>
    %90 = arith.mulf %85, %89 : vector<8x16xf32>
    %c0_32 = arith.constant 0 : index
    %c32 = arith.constant 32 : index
    %91 = vector.load %arg6[%c0_32, %c32] : memref<8x128xf32, #tpu.memory_space<vmem>>, vector<8x16xf32>
    tpu.vector_store %arg6[%c0_32, %c32], %90 {strides = array<i32>} : memref<8x128xf32, #tpu.memory_space<vmem>>, vector<8x16xf32>,
    %cst_33 = arith.constant dense<0.000000e+00> : vector<8x64xf32>
    %92 = tpu.matmul %90, %14, %cst_33 {dimension_numbers = #tpu.dot_dimension_numbers<[1], [0], [0], [1], [0, 0, 1, 1], [], []>} : vector<8x16xf32>, vector<16x64xf32>, vector<8x64xf32> -> vector<8x64xf32>
    %93 = arith.addf %9, %92 : vector<8x64xf32>
    %94 = math.tanh %93 : vector<8x64xf32>
    %95 = vector.extract_strided_slice %94 {offsets = [0, 0], sizes = [8, 16], strides = [1, 1]} : vector<8x64xf32> to vector<8x16xf32>
    %cst_34 = arith.constant 5.000000e-01 : f32
    %96 = vector.broadcast %cst_34 : f32 to vector<8x16xf32>
    %97 = arith.mulf %96, %95 : vector<8x16xf32>
    %cst_35 = arith.constant 5.000000e-01 : f32
    %98 = vector.broadcast %cst_35 : f32 to vector<8x16xf32>
    %99 = arith.addf %97, %98 : vector<8x16xf32>
    %100 = vector.extract_strided_slice %94 {offsets = [0, 16], sizes = [8, 16], strides = [1, 1]} : vector<8x64xf32> to vector<8x16xf32>
    %cst_36 = arith.constant 5.000000e-01 : f32
    %101 = vector.broadcast %cst_36 : f32 to vector<8x16xf32>
    %102 = arith.mulf %101, %100 : vector<8x16xf32>
    %cst_37 = arith.constant 5.000000e-01 : f32
    %103 = vector.broadcast %cst_37 : f32 to vector<8x16xf32>
    %104 = arith.addf %102, %103 : vector<8x16xf32>
    %105 = vector.extract_strided_slice %94 {offsets = [0, 32], sizes = [8, 16], strides = [1, 1]} : vector<8x64xf32> to vector<8x16xf32>
    %106 = vector.extract_strided_slice %94 {offsets = [0, 48], sizes = [8, 16], strides = [1, 1]} : vector<8x64xf32> to vector<8x16xf32>
    %cst_38 = arith.constant 5.000000e-01 : f32
    %107 = vector.broadcast %cst_38 : f32 to vector<8x16xf32>
    %108 = arith.mulf %107, %106 : vector<8x16xf32>
    %cst_39 = arith.constant 5.000000e-01 : f32
    %109 = vector.broadcast %cst_39 : f32 to vector<8x16xf32>
    %110 = arith.addf %108, %109 : vector<8x16xf32>
    %111 = arith.mulf %104, %88 : vector<8x16xf32>
    %112 = arith.mulf %99, %105 : vector<8x16xf32>
    %113 = arith.addf %111, %112 : vector<8x16xf32>
    %114 = math.tanh %113 : vector<8x16xf32>
    %115 = arith.mulf %110, %114 : vector<8x16xf32>
    %c0_40 = arith.constant 0 : index
    %c48 = arith.constant 48 : index
    %116 = vector.load %arg6[%c0_40, %c48] : memref<8x128xf32, #tpu.memory_space<vmem>>, vector<8x16xf32>
    tpu.vector_store %arg6[%c0_40, %c48], %115 {strides = array<i32>} : memref<8x128xf32, #tpu.memory_space<vmem>>, vector<8x16xf32>,
    %cst_41 = arith.constant dense<0.000000e+00> : vector<8x64xf32>
    %117 = tpu.matmul %115, %14, %cst_41 {dimension_numbers = #tpu.dot_dimension_numbers<[1], [0], [0], [1], [0, 0, 1, 1], [], []>} : vector<8x16xf32>, vector<16x64xf32>, vector<8x64xf32> -> vector<8x64xf32>
    %118 = arith.addf %10, %117 : vector<8x64xf32>
    %119 = math.tanh %118 : vector<8x64xf32>
    %120 = vector.extract_strided_slice %119 {offsets = [0, 0], sizes = [8, 16], strides = [1, 1]} : vector<8x64xf32> to vector<8x16xf32>
    %cst_42 = arith.constant 5.000000e-01 : f32
    %121 = vector.broadcast %cst_42 : f32 to vector<8x16xf32>
    %122 = arith.mulf %121, %120 : vector<8x16xf32>
    %cst_43 = arith.constant 5.000000e-01 : f32
    %123 = vector.broadcast %cst_43 : f32 to vector<8x16xf32>
    %124 = arith.addf %122, %123 : vector<8x16xf32>
    %125 = vector.extract_strided_slice %119 {offsets = [0, 16], sizes = [8, 16], strides = [1, 1]} : vector<8x64xf32> to vector<8x16xf32>
    %cst_44 = arith.constant 5.000000e-01 : f32
    %126 = vector.broadcast %cst_44 : f32 to vector<8x16xf32>
    %127 = arith.mulf %126, %125 : vector<8x16xf32>
    %cst_45 = arith.constant 5.000000e-01 : f32
    %128 = vector.broadcast %cst_45 : f32 to vector<8x16xf32>
    %129 = arith.addf %127, %128 : vector<8x16xf32>
    %130 = vector.extract_strided_slice %119 {offsets = [0, 32], sizes = [8, 16], strides = [1, 1]} : vector<8x64xf32> to vector<8x16xf32>
    %131 = vector.extract_strided_slice %119 {offsets = [0, 48], sizes = [8, 16], strides = [1, 1]} : vector<8x64xf32> to vector<8x16xf32>
    %cst_46 = arith.constant 5.000000e-01 : f32
    %132 = vector.broadcast %cst_46 : f32 to vector<8x16xf32>
    %133 = arith.mulf %132, %131 : vector<8x16xf32>
    %cst_47 = arith.constant 5.000000e-01 : f32
    %134 = vector.broadcast %cst_47 : f32 to vector<8x16xf32>
    %135 = arith.addf %133, %134 : vector<8x16xf32>
    %136 = arith.mulf %129, %113 : vector<8x16xf32>
    %137 = arith.mulf %124, %130 : vector<8x16xf32>
    %138 = arith.addf %136, %137 : vector<8x16xf32>
    %139 = math.tanh %138 : vector<8x16xf32>
    %140 = arith.mulf %135, %139 : vector<8x16xf32>
    %c0_48 = arith.constant 0 : index
    %c64 = arith.constant 64 : index
    %141 = vector.load %arg6[%c0_48, %c64] : memref<8x128xf32, #tpu.memory_space<vmem>>, vector<8x16xf32>
    tpu.vector_store %arg6[%c0_48, %c64], %140 {strides = array<i32>} : memref<8x128xf32, #tpu.memory_space<vmem>>, vector<8x16xf32>,
    %cst_49 = arith.constant dense<0.000000e+00> : vector<8x64xf32>
    %142 = tpu.matmul %140, %14, %cst_49 {dimension_numbers = #tpu.dot_dimension_numbers<[1], [0], [0], [1], [0, 0, 1, 1], [], []>} : vector<8x16xf32>, vector<16x64xf32>, vector<8x64xf32> -> vector<8x64xf32>
    %143 = arith.addf %11, %142 : vector<8x64xf32>
    %144 = math.tanh %143 : vector<8x64xf32>
    %145 = vector.extract_strided_slice %144 {offsets = [0, 0], sizes = [8, 16], strides = [1, 1]} : vector<8x64xf32> to vector<8x16xf32>
    %cst_50 = arith.constant 5.000000e-01 : f32
    %146 = vector.broadcast %cst_50 : f32 to vector<8x16xf32>
    %147 = arith.mulf %146, %145 : vector<8x16xf32>
    %cst_51 = arith.constant 5.000000e-01 : f32
    %148 = vector.broadcast %cst_51 : f32 to vector<8x16xf32>
    %149 = arith.addf %147, %148 : vector<8x16xf32>
    %150 = vector.extract_strided_slice %144 {offsets = [0, 16], sizes = [8, 16], strides = [1, 1]} : vector<8x64xf32> to vector<8x16xf32>
    %cst_52 = arith.constant 5.000000e-01 : f32
    %151 = vector.broadcast %cst_52 : f32 to vector<8x16xf32>
    %152 = arith.mulf %151, %150 : vector<8x16xf32>
    %cst_53 = arith.constant 5.000000e-01 : f32
    %153 = vector.broadcast %cst_53 : f32 to vector<8x16xf32>
    %154 = arith.addf %152, %153 : vector<8x16xf32>
    %155 = vector.extract_strided_slice %144 {offsets = [0, 32], sizes = [8, 16], strides = [1, 1]} : vector<8x64xf32> to vector<8x16xf32>
    %156 = vector.extract_strided_slice %144 {offsets = [0, 48], sizes = [8, 16], strides = [1, 1]} : vector<8x64xf32> to vector<8x16xf32>
    %cst_54 = arith.constant 5.000000e-01 : f32
    %157 = vector.broadcast %cst_54 : f32 to vector<8x16xf32>
    %158 = arith.mulf %157, %156 : vector<8x16xf32>
    %cst_55 = arith.constant 5.000000e-01 : f32
    %159 = vector.broadcast %cst_55 : f32 to vector<8x16xf32>
    %160 = arith.addf %158, %159 : vector<8x16xf32>
    %161 = arith.mulf %154, %138 : vector<8x16xf32>
    %162 = arith.mulf %149, %155 : vector<8x16xf32>
    %163 = arith.addf %161, %162 : vector<8x16xf32>
    %164 = math.tanh %163 : vector<8x16xf32>
    %165 = arith.mulf %160, %164 : vector<8x16xf32>
    %c0_56 = arith.constant 0 : index
    %c80 = arith.constant 80 : index
    %166 = vector.load %arg6[%c0_56, %c80] : memref<8x128xf32, #tpu.memory_space<vmem>>, vector<8x16xf32>
    tpu.vector_store %arg6[%c0_56, %c80], %165 {strides = array<i32>} : memref<8x128xf32, #tpu.memory_space<vmem>>, vector<8x16xf32>,
    %cst_57 = arith.constant dense<0.000000e+00> : vector<8x64xf32>
    %167 = tpu.matmul %165, %14, %cst_57 {dimension_numbers = #tpu.dot_dimension_numbers<[1], [0], [0], [1], [0, 0, 1, 1], [], []>} : vector<8x16xf32>, vector<16x64xf32>, vector<8x64xf32> -> vector<8x64xf32>
    %168 = arith.addf %12, %167 : vector<8x64xf32>
    %169 = math.tanh %168 : vector<8x64xf32>
    %170 = vector.extract_strided_slice %169 {offsets = [0, 0], sizes = [8, 16], strides = [1, 1]} : vector<8x64xf32> to vector<8x16xf32>
    %cst_58 = arith.constant 5.000000e-01 : f32
    %171 = vector.broadcast %cst_58 : f32 to vector<8x16xf32>
    %172 = arith.mulf %171, %170 : vector<8x16xf32>
    %cst_59 = arith.constant 5.000000e-01 : f32
    %173 = vector.broadcast %cst_59 : f32 to vector<8x16xf32>
    %174 = arith.addf %172, %173 : vector<8x16xf32>
    %175 = vector.extract_strided_slice %169 {offsets = [0, 16], sizes = [8, 16], strides = [1, 1]} : vector<8x64xf32> to vector<8x16xf32>
    %cst_60 = arith.constant 5.000000e-01 : f32
    %176 = vector.broadcast %cst_60 : f32 to vector<8x16xf32>
    %177 = arith.mulf %176, %175 : vector<8x16xf32>
    %cst_61 = arith.constant 5.000000e-01 : f32
    %178 = vector.broadcast %cst_61 : f32 to vector<8x16xf32>
    %179 = arith.addf %177, %178 : vector<8x16xf32>
    %180 = vector.extract_strided_slice %169 {offsets = [0, 32], sizes = [8, 16], strides = [1, 1]} : vector<8x64xf32> to vector<8x16xf32>
    %181 = vector.extract_strided_slice %169 {offsets = [0, 48], sizes = [8, 16], strides = [1, 1]} : vector<8x64xf32> to vector<8x16xf32>
    %cst_62 = arith.constant 5.000000e-01 : f32
    %182 = vector.broadcast %cst_62 : f32 to vector<8x16xf32>
    %183 = arith.mulf %182, %181 : vector<8x16xf32>
    %cst_63 = arith.constant 5.000000e-01 : f32
    %184 = vector.broadcast %cst_63 : f32 to vector<8x16xf32>
    %185 = arith.addf %183, %184 : vector<8x16xf32>
    %186 = arith.mulf %179, %163 : vector<8x16xf32>
    %187 = arith.mulf %174, %180 : vector<8x16xf32>
    %188 = arith.addf %186, %187 : vector<8x16xf32>
    %189 = math.tanh %188 : vector<8x16xf32>
    %190 = arith.mulf %185, %189 : vector<8x16xf32>
    %c0_64 = arith.constant 0 : index
    %c96 = arith.constant 96 : index
    %191 = vector.load %arg6[%c0_64, %c96] : memref<8x128xf32, #tpu.memory_space<vmem>>, vector<8x16xf32>
    tpu.vector_store %arg6[%c0_64, %c96], %190 {strides = array<i32>} : memref<8x128xf32, #tpu.memory_space<vmem>>, vector<8x16xf32>,
    %cst_65 = arith.constant dense<0.000000e+00> : vector<8x64xf32>
    %192 = tpu.matmul %190, %14, %cst_65 {dimension_numbers = #tpu.dot_dimension_numbers<[1], [0], [0], [1], [0, 0, 1, 1], [], []>} : vector<8x16xf32>, vector<16x64xf32>, vector<8x64xf32> -> vector<8x64xf32>
    %193 = arith.addf %13, %192 : vector<8x64xf32>
    %194 = math.tanh %193 : vector<8x64xf32>
    %195 = vector.extract_strided_slice %194 {offsets = [0, 0], sizes = [8, 16], strides = [1, 1]} : vector<8x64xf32> to vector<8x16xf32>
    %cst_66 = arith.constant 5.000000e-01 : f32
    %196 = vector.broadcast %cst_66 : f32 to vector<8x16xf32>
    %197 = arith.mulf %196, %195 : vector<8x16xf32>
    %cst_67 = arith.constant 5.000000e-01 : f32
    %198 = vector.broadcast %cst_67 : f32 to vector<8x16xf32>
    %199 = arith.addf %197, %198 : vector<8x16xf32>
    %200 = vector.extract_strided_slice %194 {offsets = [0, 16], sizes = [8, 16], strides = [1, 1]} : vector<8x64xf32> to vector<8x16xf32>
    %cst_68 = arith.constant 5.000000e-01 : f32
    %201 = vector.broadcast %cst_68 : f32 to vector<8x16xf32>
    %202 = arith.mulf %201, %200 : vector<8x16xf32>
    %cst_69 = arith.constant 5.000000e-01 : f32
    %203 = vector.broadcast %cst_69 : f32 to vector<8x16xf32>
    %204 = arith.addf %202, %203 : vector<8x16xf32>
    %205 = vector.extract_strided_slice %194 {offsets = [0, 32], sizes = [8, 16], strides = [1, 1]} : vector<8x64xf32> to vector<8x16xf32>
    %206 = vector.extract_strided_slice %194 {offsets = [0, 48], sizes = [8, 16], strides = [1, 1]} : vector<8x64xf32> to vector<8x16xf32>
    %cst_70 = arith.constant 5.000000e-01 : f32
    %207 = vector.broadcast %cst_70 : f32 to vector<8x16xf32>
    %208 = arith.mulf %207, %206 : vector<8x16xf32>
    %cst_71 = arith.constant 5.000000e-01 : f32
    %209 = vector.broadcast %cst_71 : f32 to vector<8x16xf32>
    %210 = arith.addf %208, %209 : vector<8x16xf32>
    %211 = arith.mulf %204, %188 : vector<8x16xf32>
    %212 = arith.mulf %199, %205 : vector<8x16xf32>
    %213 = arith.addf %211, %212 : vector<8x16xf32>
    %214 = math.tanh %213 : vector<8x16xf32>
    %215 = arith.mulf %210, %214 : vector<8x16xf32>
    %c0_72 = arith.constant 0 : index
    %c112 = arith.constant 112 : index
    %216 = vector.load %arg6[%c0_72, %c112] : memref<8x128xf32, #tpu.memory_space<vmem>>, vector<8x16xf32>
    tpu.vector_store %arg6[%c0_72, %c112], %215 {strides = array<i32>} : memref<8x128xf32, #tpu.memory_space<vmem>>, vector<8x16xf32>,
    %c0_73 = arith.constant 0 : index
    %c0_74 = arith.constant 0 : index
    %217 = vector.load %arg4[%c0_73, %c0_74] : memref<129x128xf32, #tpu.memory_space<vmem>>, vector<128x128xf32>
    %c128 = arith.constant 128 : index
    %c0_75 = arith.constant 0 : index
    %218 = vector.load %arg4[%c128, %c0_75] : memref<129x128xf32, #tpu.memory_space<vmem>>, vector<1x128xf32>
    %c0_76 = arith.constant 0 : index
    %c0_77 = arith.constant 0 : index
    %219 = vector.load %arg6[%c0_76, %c0_77] : memref<8x128xf32, #tpu.memory_space<vmem>>, vector<8x128xf32>
    %cst_78 = arith.constant dense<0.000000e+00> : vector<8x128xf32>
    %220 = tpu.matmul %219, %217, %cst_78 {dimension_numbers = #tpu.dot_dimension_numbers<[1], [0], [0], [1], [0, 0, 1, 1], [], []>} : vector<8x128xf32>, vector<128x128xf32>, vector<8x128xf32> -> vector<8x128xf32>
    %221 = vector.broadcast %218 : vector<1x128xf32> to vector<8x128xf32>
    %222 = arith.addf %220, %221 : vector<8x128xf32>
    %223 = math.tanh %222 : vector<8x128xf32>
    %c0_79 = arith.constant 0 : index
    %c0_80 = arith.constant 0 : index
    %224 = vector.load %arg5[%c0_79, %c0_80] : memref<8x128xf32, #tpu.memory_space<vmem>>, vector<8x128xf32>
    tpu.vector_store %arg5[%c0_79, %c0_80], %223 {strides = array<i32>} : memref<8x128xf32, #tpu.memory_space<vmem>>, vector<8x128xf32>,
    return
  }
  func.func @transform_0(%arg0: i32) -> (i32, i32) {
    %c0_i32 = arith.constant 0 : i32
    %c0_i32_0 = arith.constant 0 : i32
    return %arg0, %c0_i32 : i32, i32
  }
  func.func @transform_1(%arg0: i32) -> (i32, i32) {
    %c0_i32 = arith.constant 0 : i32
    %c0_i32_0 = arith.constant 0 : i32
    %c0_i32_1 = arith.constant 0 : i32
    return %c0_i32, %c0_i32_0 : i32, i32
  }
  func.func @transform_2(%arg0: i32) -> (i32, i32) {
    %c0_i32 = arith.constant 0 : i32
    %c0_i32_0 = arith.constant 0 : i32
    %c0_i32_1 = arith.constant 0 : i32
    return %c0_i32, %c0_i32_0 : i32, i32
  }
  func.func @transform_3(%arg0: i32) -> (i32, i32) {
    %c0_i32 = arith.constant 0 : i32
    %c0_i32_0 = arith.constant 0 : i32
    %c0_i32_1 = arith.constant 0 : i32
    return %c0_i32, %c0_i32_0 : i32, i32
  }
  func.func @transform_4(%arg0: i32) -> (i32, i32) {
    %c0_i32 = arith.constant 0 : i32
    %c0_i32_0 = arith.constant 0 : i32
    return %arg0, %c0_i32 : i32, i32
  }
}

</mosaic_0001>

<llo_original>
// kernel: seq_bid_lstm_forward.1
$region0: #{seq_bid_lstm_forward.1}
  #allocation0 [shape = 'u32[]', space=smem, size = 0x4, offset = 0x4, fixed_abs, tag = 'smem constant byte address 0x4 - core index']
  #allocation1 [shape = 'u32[72,128]{1,0:T(1,128)}', space=vmem, size = 0x9000, scoped, tag = 'internal scratch']
  #allocation2 [shape = 'f32[8,128]{1,0:T(8,128)}', space=vmem, size = 0x1000, scoped, tag = 'scratch operand']
  %s0 = inlined_call_operand.vmem [shape: f32[8,40], index: 0, kind: input, shape index: {}]
  %s1 = inlined_call_operand.hbm [shape: f32[41,512], index: 1, kind: input, shape index: {}]
  %s2 = inlined_call_operand.hbm [shape: f32[16,64], index: 2, kind: input, shape index: {}]
  %s3 = inlined_call_operand.hbm [shape: f32[129,128], index: 3, kind: input, shape index: {}]
  %s4 = inlined_call_operand.vmem [shape: f32[8,128], index: 4, kind: output, shape index: {}]
  %s5 = sld [smem:[#allocation0]]
  $region38: #{seq_bid_lstm_forward.1} parent=0
    _
  %s7 = ssub.s32 1, %s5
  %s8 = scalar_select 0, %s7, %s5
  $region1: #{seq_bid_lstm_forward.1} parent=0
    #allocation3 [shape = 'u8[98304]{0}', space=vmem, size = 0x18000, scoped, tag = 'input window, operand 1, single buffered']
    #allocation4 [shape = 's32[1]{0}', space=sflag, size = 0x4, scoped, tag = 'scoped memory for seq_bid_lstm_forward.1']
    #allocation5 [shape = 'u8[8192]{0}', space=vmem, size = 0x2000, scoped, tag = 'input window, operand 2, single buffered']
    #allocation6 [shape = 's32[1]{0}', space=sflag, size = 0x4, scoped, tag = 'scoped memory for seq_bid_lstm_forward.1']
    #allocation7 [shape = 'u8[69632]{0}', space=vmem, size = 0x11000, scoped, tag = 'input window, operand 3, single buffered']
    %9 = vsyncpa [#allocation4], 0
    %10 = vsyncpa [#allocation6], 0
    // Predicated region
    $region2: #{seq_bid_lstm_forward.1} parent=1 // pred_check
      _
    $region3: #{seq_bid_lstm_forward.1} parent=1 // pred_check_branch
      %12 = sbr.rel (0) target = $region5
    $region4: #{seq_bid_lstm_forward.1} parent=1 // pred_region
      _
    $region5: #{seq_bid_lstm_forward.1} parent=1 // pred_fallthru
      _
    // Predicated region
    $region6: #{seq_bid_lstm_forward.1} parent=1 // pred_check
      _
    $region7: #{seq_bid_lstm_forward.1} parent=1 // pred_check_branch
      %14 = sbr.rel (0) target = $region9
    $region8: #{seq_bid_lstm_forward.1} parent=1 // pred_region
      %16 = vsyncadd [#allocation4], 0
      %s17 = sshll.u32 %s1, 4
      %s18 = int_to_ptr.hbm [resolvable:$true] %s17
      %s19 = sshll.u32 [#allocation3], 4
      %s20 = int_to_ptr.vmem [resolvable:$true] %s19
      %25 = dma.hbm_to_vmem [thread:$0]  %s18, 3072, %s20, [#allocation4], 512, 512, 32
    $region9: #{seq_bid_lstm_forward.1} parent=1 // pred_fallthru
      _
    // Predicated region
    $region10: #{seq_bid_lstm_forward.1} parent=1 // pred_check
      _
    $region11: #{seq_bid_lstm_forward.1} parent=1 // pred_check_branch
      %27 = sbr.rel (0) target = $region13
    $region12: #{seq_bid_lstm_forward.1} parent=1 // pred_region
      %29 = vsyncadd [#allocation6], 0
      %s30 = sshll.u32 %s2, 4
      %s31 = int_to_ptr.hbm [resolvable:$true] %s30
      %s32 = sshll.u32 [#allocation5], 4
      %s33 = int_to_ptr.vmem [resolvable:$true] %s32
      %38 = dma.hbm_to_vmem [thread:$0]  %s31, 256, %s33, [#allocation6], 128, 128, 8
    $region13: #{seq_bid_lstm_forward.1} parent=1 // pred_fallthru
      _
    // Predicated region
    $region14: #{seq_bid_lstm_forward.1} parent=1 // pred_check
      _
    $region15: #{seq_bid_lstm_forward.1} parent=1 // pred_check_branch
      %40 = sbr.rel (0) target = $region17
    $region16: #{seq_bid_lstm_forward.1} parent=1 // pred_region
      %42 = vsyncadd [#allocation6], 0
      %s43 = sshll.u32 %s3, 4
      %s44 = int_to_ptr.hbm [resolvable:$true] %s43
      %s45 = sshll.u32 [#allocation7], 4
      %s46 = int_to_ptr.vmem [resolvable:$true] %s45
      %51 = dma.hbm_to_vmem [thread:$0]  %s44, 2176, %s46, [#allocation6], 128, 128, 8
    $region17: #{seq_bid_lstm_forward.1} parent=1 // pred_fallthru
      _
    // Predicated region
    $region18: #{seq_bid_lstm_forward.1} parent=1 // pred_check
      _
    $region19: #{seq_bid_lstm_forward.1} parent=1 // pred_check_branch
      %53 = sbr.rel (0) target = $region21
    $region20: #{seq_bid_lstm_forward.1} parent=1 // pred_region
      %55 = dma.done [#allocation4], 3072
    $region21: #{seq_bid_lstm_forward.1} parent=1 // pred_fallthru
      _
    // Predicated region
    $region22: #{seq_bid_lstm_forward.1} parent=1 // pred_check
      _
    $region23: #{seq_bid_lstm_forward.1} parent=1 // pred_check_branch
      %57 = sbr.rel (0) target = $region25
    $region24: #{seq_bid_lstm_forward.1} parent=1 // pred_region
      %59 = dma.done [#allocation6], 256
    $region25: #{seq_bid_lstm_forward.1} parent=1 // pred_fallthru
      _
    // Predicated region
    $region26: #{seq_bid_lstm_forward.1} parent=1 // pred_check
      _
    $region27: #{seq_bid_lstm_forward.1} parent=1 // pred_check_branch
      %61 = sbr.rel (0) target = $region29
    $region28: #{seq_bid_lstm_forward.1} parent=1 // pred_region
      %63 = dma.done [#allocation6], 2176
    $region29: #{seq_bid_lstm_forward.1} parent=1 // pred_fallthru
      _
    %v64 = vld [vmem:[#allocation3] sm:$0xff]
    %v65 = vld [vmem:[#allocation3 + $0x8] sm:$0xff]
    %v66 = vld [vmem:[#allocation3 + $0x10] sm:$0xff]
    %v67 = vld [vmem:[#allocation3 + $0x18] sm:$0xff]
    %v68 = vld [vmem:[#allocation3 + $0x20] sm:$0xff]
    %v69 = vld [vmem:[#allocation3 + $0x28] sm:$0xff]
    %v70 = vld [vmem:[#allocation3 + $0x30] sm:$0xff]
    %v71 = vld [vmem:[#allocation3 + $0x38] sm:$0xff]
    %v72 = vld [vmem:[#allocation3 + $0x40] sm:$0xff]
    %v73 = vld [vmem:[#allocation3 + $0x48] sm:$0xff]
    %v74 = vld [vmem:[#allocation3 + $0x50] sm:$0xff]
    %v75 = vld [vmem:[#allocation3 + $0x58] sm:$0xff]
    %v76 = vld [vmem:[#allocation3 + $0x60] sm:$0xff]
    %v77 = vld [vmem:[#allocation3 + $0x68] sm:$0xff]
    %v78 = vld [vmem:[#allocation3 + $0x70] sm:$0xff]
    %v79 = vld [vmem:[#allocation3 + $0x78] sm:$0xff]
    %v80 = vld [vmem:[#allocation3 + $0x80] sm:$0xff]
    %v81 = vld [vmem:[#allocation3 + $0x88] sm:$0xff]
    %v82 = vld [vmem:[#allocation3 + $0x90] sm:$0xff]
    %v83 = vld [vmem:[#allocation3 + $0x98] sm:$0xff]
    %s84 = scalar_lea.vmem [#allocation3], 160
    %v85 = vld [vmem:[%s84] ss:$8 sm:$0xf]
    %v86 = vld [vmem:[%s0] sm:$0xff]
    %v88 = vperm.slane %v85, 0
    %v89 = vperm.slane %v85, 1
    %v90 = vperm.slane %v85, 2
    %v91 = vperm.slane %v85, 3
    %vm96 = vcmask 326656
    %v98 = vsel %vm96, %v86, 0
    %100 = vmatpush.msra.mxu0 0.0
    %101 = vmatpush.msra.mxu0 0.0
    %102 = vmatpush.msra.mxu0 0.0
    %103 = vmatpush.msra.mxu0 0.0
    %104 = vmatpush.msra.mxu0 0.0
    %105 = vmatpush.msra.mxu0 0.0
    %106 = vmatpush.msra.mxu0 0.0
    %107 = vmatpush.msra.mxu0 0.0
    %108 = vmatpush.msra.mxu0 0.0
    %109 = vmatpush.msra.mxu0 0.0
    %110 = vmatpush.msra.mxu0 0.0
    %111 = vmatpush.msra.mxu0 %v80
    %112 = vmatpush.msra.mxu0 %v76
    %113 = vmatpush.msra.mxu0 %v72
    %114 = vmatpush.msra.mxu0 %v68
    %115 = vmatpush.msra.mxu0 %v64
    %116 = vmatmul.f32.gmra.mxu0 %v98
    %v117 = vpop.f32.mrf.mxu0
    %v118 = vadd.f32 %v88, %v117
    %119 = vdwg.mxu0
    %120 = vmatpush.msra.mxu0 0.0
    %121 = vmatpush.msra.mxu0 0.0
    %122 = vmatpush.msra.mxu0 0.0
    %123 = vmatpush.msra.mxu0 0.0
    %124 = vmatpush.msra.mxu0 0.0
    %125 = vmatpush.msra.mxu0 0.0
    %126 = vmatpush.msra.mxu0 0.0
    %127 = vmatpush.msra.mxu0 0.0
    %128 = vmatpush.msra.mxu0 0.0
    %129 = vmatpush.msra.mxu0 0.0
    %130 = vmatpush.msra.mxu0 0.0
    %131 = vmatpush.msra.mxu0 %v81
    %132 = vmatpush.msra.mxu0 %v77
    %133 = vmatpush.msra.mxu0 %v73
    %134 = vmatpush.msra.mxu0 %v69
    %135 = vmatpush.msra.mxu0 %v65
    %136 = vmatmul.f32.gmra.mxu0 %v98
    %v137 = vpop.f32.mrf.mxu0
    %v138 = vadd.f32 %v89, %v137
    %139 = vdwg.mxu0
    %140 = vmatpush.msra.mxu0 0.0
    %141 = vmatpush.msra.mxu0 0.0
    %142 = vmatpush.msra.mxu0 0.0
    %143 = vmatpush.msra.mxu0 0.0
    %144 = vmatpush.msra.mxu0 0.0
    %145 = vmatpush.msra.mxu0 0.0
    %146 = vmatpush.msra.mxu0 0.0
    %147 = vmatpush.msra.mxu0 0.0
    %148 = vmatpush.msra.mxu0 0.0
    %149 = vmatpush.msra.mxu0 0.0
    %150 = vmatpush.msra.mxu0 0.0
    %151 = vmatpush.msra.mxu0 %v82
    %152 = vmatpush.msra.mxu0 %v78
    %153 = vmatpush.msra.mxu0 %v74
    %154 = vmatpush.msra.mxu0 %v70
    %155 = vmatpush.msra.mxu0 %v66
    %156 = vmatmul.f32.gmra.mxu0 %v98
    %v157 = vpop.f32.mrf.mxu0
    %v158 = vadd.f32 %v90, %v157
    %159 = vdwg.mxu0
    %160 = vmatpush.msra.mxu0 0.0
    %161 = vmatpush.msra.mxu0 0.0
    %162 = vmatpush.msra.mxu0 0.0
    %163 = vmatpush.msra.mxu0 0.0
    %164 = vmatpush.msra.mxu0 0.0
    %165 = vmatpush.msra.mxu0 0.0
    %166 = vmatpush.msra.mxu0 0.0
    %167 = vmatpush.msra.mxu0 0.0
    %168 = vmatpush.msra.mxu0 0.0
    %169 = vmatpush.msra.mxu0 0.0
    %170 = vmatpush.msra.mxu0 0.0
    %171 = vmatpush.msra.mxu0 %v83
    %172 = vmatpush.msra.mxu0 %v79
    %173 = vmatpush.msra.mxu0 %v75
    %174 = vmatpush.msra.mxu0 %v71
    %175 = vmatpush.msra.mxu0 %v67
    %176 = vmatmul.f32.gmra.mxu0 %v98
    %v177 = vpop.f32.mrf.mxu0
    %v178 = vadd.f32 %v91, %v177
    %179 = vdwg.mxu0
    %v180 = vld [vmem:[#allocation5] sm:$0xff]
    %v181 = vld [vmem:[#allocation5 + $0x8] sm:$0xff]
    %vm182 = vcmask 130048
    %v184 = vsel %vm182, 0.0, 0
    %186 = vmatpush.msra.mxu0 0.0
    %187 = vmatpush.msra.mxu0 0.0
    %188 = vmatpush.msra.mxu0 0.0
    %189 = vmatpush.msra.mxu0 0.0
    %190 = vmatpush.msra.mxu0 0.0
    %191 = vmatpush.msra.mxu0 0.0
    %192 = vmatpush.msra.mxu0 0.0
    %193 = vmatpush.msra.mxu0 0.0
    %194 = vmatpush.msra.mxu0 0.0
    %195 = vmatpush.msra.mxu0 0.0
    %196 = vmatpush.msra.mxu0 0.0
    %197 = vmatpush.msra.mxu0 0.0
    %198 = vmatpush.msra.mxu0 0.0
    %199 = vmatpush.msra.mxu0 0.0
    %200 = vmatpush.msra.mxu0 %v181
    %201 = vmatpush.msra.mxu0 %v180
    %202 = vmatmul.f32.gmra.mxu0 %v184
    %v203 = vpop.f32.mrf.mxu0
    %v204 = vadd.f32 0.0, %v203
    %205 = vdwg.mxu0
    %v206 = vadd.f32 %v118, %v204
    %v207 = vtanh.pop %v206
    %v208 = vmul.f32 %v207, 0.5
    %v209 = vadd.f32 %v208, 0.5
    %v210 = vmul.f32 %v209, 0.0
    %212 = vrot.lane.b32.xlu0 %v207, 96
    %v213 = vpop.permute.xlu0 %212
    %v215 = vmul.f32 %v209, %v213
    %217 = vrot.lane.b32.xlu0 %v215, 16
    %v218 = vpop.permute.xlu0 %217
    %v220 = vadd.f32 %v210, %v218
    %v221 = vtanh.pop %v220
    %223 = vrot.lane.b32.xlu0 %v221, 32
    %v224 = vpop.permute.xlu0 %223
    %v226 = vmul.f32 %v209, %v224
    %228 = vrot.lane.b32.xlu0 %v226, 80
    %v229 = vpop.permute.xlu0 %228
    %231 = vst.msk [vmem:[#allocation2] sm:$0xff] %vm182, %v229
    %v232 = vsel %vm182, %v229, 0
    %234 = vmatpush.msra.mxu0 0.0
    %235 = vmatpush.msra.mxu0 0.0
    %236 = vmatpush.msra.mxu0 0.0
    %237 = vmatpush.msra.mxu0 0.0
    %238 = vmatpush.msra.mxu0 0.0
    %239 = vmatpush.msra.mxu0 0.0
    %240 = vmatpush.msra.mxu0 0.0
    %241 = vmatpush.msra.mxu0 0.0
    %242 = vmatpush.msra.mxu0 0.0
    %243 = vmatpush.msra.mxu0 0.0
    %244 = vmatpush.msra.mxu0 0.0
    %245 = vmatpush.msra.mxu0 0.0
    %246 = vmatpush.msra.mxu0 0.0
    %247 = vmatpush.msra.mxu0 0.0
    %248 = vmatpush.msra.mxu0 %v181
    %249 = vmatpush.msra.mxu0 %v180
    %250 = vmatmul.f32.gmra.mxu0 %v232
    %v251 = vpop.f32.mrf.mxu0
    %v252 = vadd.f32 0.0, %v251
    %253 = vdwg.mxu0
    %255 = vrot.lane.b32.xlu0 %v252, 64
    %v256 = vpop.permute.xlu0 %255
    %v258 = vadd.f32 %v118, %v256
    %v259 = vtanh.pop %v258
    %v260 = vmul.f32 %v259, 0.5
    %v261 = vadd.f32 %v260, 0.5
    %263 = vrot.lane.b32.xlu0 %v220, 64
    %v264 = vpop.permute.xlu0 %263
    %v266 = vmul.f32 %v261, %v264
    %268 = vrot.lane.b32.xlu0 %v259, 96
    %v269 = vpop.permute.xlu0 %268
    %v271 = vmul.f32 %v261, %v269
    %273 = vrot.lane.b32.xlu0 %v271, 16
    %v274 = vpop.permute.xlu0 %273
    %v276 = vadd.f32 %v266, %v274
    %v277 = vtanh.pop %v276
    %279 = vrot.lane.b32.xlu0 %v277, 32
    %v280 = vpop.permute.xlu0 %279
    %v282 = vmul.f32 %v261, %v280
    %284 = vrot.lane.b32.xlu0 %v282, 32
    %v285 = vpop.permute.xlu0 %284
    %vm287 = vcmask 261248
    %288 = vst.msk [vmem:[#allocation2] sm:$0xff] %vm287, %v285
    %289 = vrot.lane.b32.xlu0 %v282, 16
    %v290 = vpop.permute.xlu0 %289
    %v291 = vsel %vm182, %v290, 0
    %293 = vmatpush.msra.mxu0 0.0
    %294 = vmatpush.msra.mxu0 0.0
    %295 = vmatpush.msra.mxu0 0.0
    %296 = vmatpush.msra.mxu0 0.0
    %297 = vmatpush.msra.mxu0 0.0
    %298 = vmatpush.msra.mxu0 0.0
    %299 = vmatpush.msra.mxu0 0.0
    %300 = vmatpush.msra.mxu0 0.0
    %301 = vmatpush.msra.mxu0 0.0
    %302 = vmatpush.msra.mxu0 0.0
    %303 = vmatpush.msra.mxu0 0.0
    %304 = vmatpush.msra.mxu0 0.0
    %305 = vmatpush.msra.mxu0 0.0
    %306 = vmatpush.msra.mxu0 0.0
    %307 = vmatpush.msra.mxu0 %v181
    %308 = vmatpush.msra.mxu0 %v180
    %309 = vmatmul.f32.gmra.mxu0 %v291
    %v310 = vpop.f32.mrf.mxu0
    %v311 = vadd.f32 0.0, %v310
    %312 = vdwg.mxu0
    %v313 = vadd.f32 %v138, %v311
    %v314 = vtanh.pop %v313
    %v315 = vmul.f32 %v314, 0.5
    %v316 = vadd.f32 %v315, 0.5
    %318 = vrot.lane.b32.xlu0 %v276, 64
    %v319 = vpop.permute.xlu0 %318
    %v321 = vmul.f32 %v316, %v319
    %323 = vrot.lane.b32.xlu0 %v314, 96
    %v324 = vpop.permute.xlu0 %323
    %v326 = vmul.f32 %v316, %v324
    %328 = vrot.lane.b32.xlu0 %v326, 16
    %v329 = vpop.permute.xlu0 %328
    %v331 = vadd.f32 %v321, %v329
    %v332 = vtanh.pop %v331
    %334 = vrot.lane.b32.xlu0 %v332, 32
    %v335 = vpop.permute.xlu0 %334
    %v337 = vmul.f32 %v316, %v335
    %339 = vrot.lane.b32.xlu0 %v337, 112
    %v340 = vpop.permute.xlu0 %339
    %vm342 = vcmask 392448
    %343 = vst.msk [vmem:[#allocation2] sm:$0xff] %vm342, %v340
    %344 = vrot.lane.b32.xlu0 %v337, 80
    %v345 = vpop.permute.xlu0 %344
    %v346 = vsel %vm182, %v345, 0
    %348 = vmatpush.msra.mxu0 0.0
    %349 = vmatpush.msra.mxu0 0.0
    %350 = vmatpush.msra.mxu0 0.0
    %351 = vmatpush.msra.mxu0 0.0
    %352 = vmatpush.msra.mxu0 0.0
    %353 = vmatpush.msra.mxu0 0.0
    %354 = vmatpush.msra.mxu0 0.0
    %355 = vmatpush.msra.mxu0 0.0
    %356 = vmatpush.msra.mxu0 0.0
    %357 = vmatpush.msra.mxu0 0.0
    %358 = vmatpush.msra.mxu0 0.0
    %359 = vmatpush.msra.mxu0 0.0
    %360 = vmatpush.msra.mxu0 0.0
    %361 = vmatpush.msra.mxu0 0.0
    %362 = vmatpush.msra.mxu0 %v181
    %363 = vmatpush.msra.mxu0 %v180
    %364 = vmatmul.f32.gmra.mxu0 %v346
    %v365 = vpop.f32.mrf.mxu0
    %v366 = vadd.f32 0.0, %v365
    %367 = vdwg.mxu0
    %369 = vrot.lane.b32.xlu0 %v366, 64
    %v370 = vpop.permute.xlu0 %369
    %v372 = vadd.f32 %v138, %v370
    %v373 = vtanh.pop %v372
    %v374 = vmul.f32 %v373, 0.5
    %v375 = vadd.f32 %v374, 0.5
    %377 = vrot.lane.b32.xlu0 %v331, 64
    %v378 = vpop.permute.xlu0 %377
    %v380 = vmul.f32 %v375, %v378
    %382 = vrot.lane.b32.xlu0 %v373, 96
    %v383 = vpop.permute.xlu0 %382
    %v385 = vmul.f32 %v375, %v383
    %387 = vrot.lane.b32.xlu0 %v385, 16
    %v388 = vpop.permute.xlu0 %387
    %v390 = vadd.f32 %v380, %v388
    %v391 = vtanh.pop %v390
    %393 = vrot.lane.b32.xlu0 %v391, 32
    %v394 = vpop.permute.xlu0 %393
    %v396 = vmul.f32 %v375, %v394
    %398 = vrot.lane.b32.xlu0 %v396, 64
    %v399 = vpop.permute.xlu0 %398
    %vm401 = vcmask 523648
    %402 = vst.msk [vmem:[#allocation2] sm:$0xff] %vm401, %v399
    %403 = vrot.lane.b32.xlu0 %v396, 16
    %v404 = vpop.permute.xlu0 %403
    %v405 = vsel %vm182, %v404, 0
    %407 = vmatpush.msra.mxu0 0.0
    %408 = vmatpush.msra.mxu0 0.0
    %409 = vmatpush.msra.mxu0 0.0
    %410 = vmatpush.msra.mxu0 0.0
    %411 = vmatpush.msra.mxu0 0.0
    %412 = vmatpush.msra.mxu0 0.0
    %413 = vmatpush.msra.mxu0 0.0
    %414 = vmatpush.msra.mxu0 0.0
    %415 = vmatpush.msra.mxu0 0.0
    %416 = vmatpush.msra.mxu0 0.0
    %417 = vmatpush.msra.mxu0 0.0
    %418 = vmatpush.msra.mxu0 0.0
    %419 = vmatpush.msra.mxu0 0.0
    %420 = vmatpush.msra.mxu0 0.0
    %421 = vmatpush.msra.mxu0 %v181
    %422 = vmatpush.msra.mxu0 %v180
    %423 = vmatmul.f32.gmra.mxu0 %v405
    %v424 = vpop.f32.mrf.mxu0
    %v425 = vadd.f32 0.0, %v424
    %426 = vdwg.mxu0
    %v427 = vadd.f32 %v158, %v425
    %v428 = vtanh.pop %v427
    %v429 = vmul.f32 %v428, 0.5
    %v430 = vadd.f32 %v429, 0.5
    %432 = vrot.lane.b32.xlu0 %v390, 64
    %v433 = vpop.permute.xlu0 %432
    %v435 = vmul.f32 %v430, %v433
    %437 = vrot.lane.b32.xlu0 %v428, 96
    %v438 = vpop.permute.xlu0 %437
    %v440 = vmul.f32 %v430, %v438
    %442 = vrot.lane.b32.xlu0 %v440, 16
    %v443 = vpop.permute.xlu0 %442
    %v445 = vadd.f32 %v435, %v443
    %v446 = vtanh.pop %v445
    %448 = vrot.lane.b32.xlu0 %v446, 32
    %v449 = vpop.permute.xlu0 %448
    %v451 = vmul.f32 %v430, %v449
    %453 = vrot.lane.b32.xlu0 %v451, 16
    %v454 = vpop.permute.xlu0 %453
    %vm456 = vcmask 654848
    %457 = vst.msk [vmem:[#allocation2] sm:$0xff] %vm456, %v454
    %458 = vrot.lane.b32.xlu0 %v451, 80
    %v459 = vpop.permute.xlu0 %458
    %v460 = vsel %vm182, %v459, 0
    %462 = vmatpush.msra.mxu0 0.0
    %463 = vmatpush.msra.mxu0 0.0
    %464 = vmatpush.msra.mxu0 0.0
    %465 = vmatpush.msra.mxu0 0.0
    %466 = vmatpush.msra.mxu0 0.0
    %467 = vmatpush.msra.mxu0 0.0
    %468 = vmatpush.msra.mxu0 0.0
    %469 = vmatpush.msra.mxu0 0.0
    %470 = vmatpush.msra.mxu0 0.0
    %471 = vmatpush.msra.mxu0 0.0
    %472 = vmatpush.msra.mxu0 0.0
    %473 = vmatpush.msra.mxu0 0.0
    %474 = vmatpush.msra.mxu0 0.0
    %475 = vmatpush.msra.mxu0 0.0
    %476 = vmatpush.msra.mxu0 %v181
    %477 = vmatpush.msra.mxu0 %v180
    %478 = vmatmul.f32.gmra.mxu0 %v460
    %v479 = vpop.f32.mrf.mxu0
    %v480 = vadd.f32 0.0, %v479
    %481 = vdwg.mxu0
    %483 = vrot.lane.b32.xlu0 %v480, 64
    %v484 = vpop.permute.xlu0 %483
    %v486 = vadd.f32 %v158, %v484
    %v487 = vtanh.pop %v486
    %v488 = vmul.f32 %v487, 0.5
    %v489 = vadd.f32 %v488, 0.5
    %491 = vrot.lane.b32.xlu0 %v445, 64
    %v492 = vpop.permute.xlu0 %491
    %v494 = vmul.f32 %v489, %v492
    %496 = vrot.lane.b32.xlu0 %v487, 96
    %v497 = vpop.permute.xlu0 %496
    %v499 = vmul.f32 %v489, %v497
    %501 = vrot.lane.b32.xlu0 %v499, 16
    %v502 = vpop.permute.xlu0 %501
    %v504 = vadd.f32 %v494, %v502
    %v505 = vtanh.pop %v504
    %507 = vrot.lane.b32.xlu0 %v505, 32
    %v508 = vpop.permute.xlu0 %507
    %v510 = vmul.f32 %v489, %v508
    %512 = vrot.lane.b32.xlu0 %v510, 96
    %v513 = vpop.permute.xlu0 %512
    %vm515 = vcmask 786048
    %516 = vst.msk [vmem:[#allocation2] sm:$0xff] %vm515, %v513
    %517 = vrot.lane.b32.xlu0 %v510, 16
    %v518 = vpop.permute.xlu0 %517
    %v519 = vsel %vm182, %v518, 0
    %521 = vmatpush.msra.mxu0 0.0
    %522 = vmatpush.msra.mxu0 0.0
    %523 = vmatpush.msra.mxu0 0.0
    %524 = vmatpush.msra.mxu0 0.0
    %525 = vmatpush.msra.mxu0 0.0
    %526 = vmatpush.msra.mxu0 0.0
    %527 = vmatpush.msra.mxu0 0.0
    %528 = vmatpush.msra.mxu0 0.0
    %529 = vmatpush.msra.mxu0 0.0
    %530 = vmatpush.msra.mxu0 0.0
    %531 = vmatpush.msra.mxu0 0.0
    %532 = vmatpush.msra.mxu0 0.0
    %533 = vmatpush.msra.mxu0 0.0
    %534 = vmatpush.msra.mxu0 0.0
    %535 = vmatpush.msra.mxu0 %v181
    %536 = vmatpush.msra.mxu0 %v180
    %537 = vmatmul.f32.gmra.mxu0 %v519
    %v538 = vpop.f32.mrf.mxu0
    %v539 = vadd.f32 0.0, %v538
    %540 = vdwg.mxu0
    %v541 = vadd.f32 %v178, %v539
    %v542 = vtanh.pop %v541
    %v543 = vmul.f32 %v542, 0.5
    %v544 = vadd.f32 %v543, 0.5
    %546 = vrot.lane.b32.xlu0 %v504, 64
    %v547 = vpop.permute.xlu0 %546
    %v549 = vmul.f32 %v544, %v547
    %551 = vrot.lane.b32.xlu0 %v542, 96
    %v552 = vpop.permute.xlu0 %551
    %v554 = vmul.f32 %v544, %v552
    %556 = vrot.lane.b32.xlu0 %v554, 16
    %v557 = vpop.permute.xlu0 %556
    %v559 = vadd.f32 %v549, %v557
    %v560 = vtanh.pop %v559
    %562 = vrot.lane.b32.xlu0 %v560, 32
    %v563 = vpop.permute.xlu0 %562
    %v565 = vmul.f32 %v544, %v563
    %567 = vrot.lane.b32.xlu0 %v565, 48
    %v568 = vpop.permute.xlu0 %567
    %vm570 = vcmask 917248
    %571 = vst.msk [vmem:[#allocation2] sm:$0xff] %vm570, %v568
    %572 = vrot.lane.b32.xlu0 %v565, 80
    %v573 = vpop.permute.xlu0 %572
    %v574 = vsel %vm182, %v573, 0
    %576 = vmatpush.msra.mxu0 0.0
    %577 = vmatpush.msra.mxu0 0.0
    %578 = vmatpush.msra.mxu0 0.0
    %579 = vmatpush.msra.mxu0 0.0
    %580 = vmatpush.msra.mxu0 0.0
    %581 = vmatpush.msra.mxu0 0.0
    %582 = vmatpush.msra.mxu0 0.0
    %583 = vmatpush.msra.mxu0 0.0
    %584 = vmatpush.msra.mxu0 0.0
    %585 = vmatpush.msra.mxu0 0.0
    %586 = vmatpush.msra.mxu0 0.0
    %587 = vmatpush.msra.mxu0 0.0
    %588 = vmatpush.msra.mxu0 0.0
    %589 = vmatpush.msra.mxu0 0.0
    %590 = vmatpush.msra.mxu0 %v181
    %591 = vmatpush.msra.mxu0 %v180
    %592 = vmatmul.f32.gmra.mxu0 %v574
    %v593 = vpop.f32.mrf.mxu0
    %v594 = vadd.f32 0.0, %v593
    %595 = vdwg.mxu0
    %597 = vrot.lane.b32.xlu0 %v594, 64
    %v598 = vpop.permute.xlu0 %597
    %v600 = vadd.f32 %v178, %v598
    %v601 = vtanh.pop %v600
    %v602 = vmul.f32 %v601, 0.5
    %v603 = vadd.f32 %v602, 0.5
    %605 = vrot.lane.b32.xlu0 %v559, 64
    %v606 = vpop.permute.xlu0 %605
    %v608 = vmul.f32 %v603, %v606
    %610 = vrot.lane.b32.xlu0 %v601, 96
    %v611 = vpop.permute.xlu0 %610
    %v613 = vmul.f32 %v603, %v611
    %615 = vrot.lane.b32.xlu0 %v613, 16
    %v616 = vpop.permute.xlu0 %615
    %v618 = vadd.f32 %v608, %v616
    %v619 = vtanh.pop %v618
    %621 = vrot.lane.b32.xlu0 %v619, 32
    %v622 = vpop.permute.xlu0 %621
    %v624 = vmul.f32 %v603, %v622
    %vm625 = vcmask 1048448
    %626 = vst.msk [vmem:[#allocation2] sm:$0xff] %vm625, %v624
    %v627 = vld [vmem:[#allocation7] sm:$0xff]
    %v628 = vld [vmem:[#allocation7 + $0x8] sm:$0xff]
    %v629 = vld [vmem:[#allocation7 + $0x10] sm:$0xff]
    %v630 = vld [vmem:[#allocation7 + $0x18] sm:$0xff]
    %v631 = vld [vmem:[#allocation7 + $0x20] sm:$0xff]
    %v632 = vld [vmem:[#allocation7 + $0x28] sm:$0xff]
    %v633 = vld [vmem:[#allocation7 + $0x30] sm:$0xff]
    %v634 = vld [vmem:[#allocation7 + $0x38] sm:$0xff]
    %v635 = vld [vmem:[#allocation7 + $0x40] sm:$0xff]
    %v636 = vld [vmem:[#allocation7 + $0x48] sm:$0xff]
    %v637 = vld [vmem:[#allocation7 + $0x50] sm:$0xff]
    %v638 = vld [vmem:[#allocation7 + $0x58] sm:$0xff]
    %v639 = vld [vmem:[#allocation7 + $0x60] sm:$0xff]
    %v640 = vld [vmem:[#allocation7 + $0x68] sm:$0xff]
    %v641 = vld [vmem:[#allocation7 + $0x70] sm:$0xff]
    %v642 = vld [vmem:[#allocation7 + $0x78] sm:$0xff]
    %v643 = vld [vmem:[#allocation7 + $0x80] sm:$0x1]
    %v644 = vld [vmem:[#allocation2] sm:$0xff]
    %v645 = vperm.slane %v643, 0
    %646 = vmatpush.msra.mxu0 %v642
    %647 = vmatpush.msra.mxu0 %v641
    %648 = vmatpush.msra.mxu0 %v640
    %649 = vmatpush.msra.mxu0 %v639
    %650 = vmatpush.msra.mxu0 %v638
    %651 = vmatpush.msra.mxu0 %v637
    %652 = vmatpush.msra.mxu0 %v636
    %653 = vmatpush.msra.mxu0 %v635
    %654 = vmatpush.msra.mxu0 %v634
    %655 = vmatpush.msra.mxu0 %v633
    %656 = vmatpush.msra.mxu0 %v632
    %657 = vmatpush.msra.mxu0 %v631
    %658 = vmatpush.msra.mxu0 %v630
    %659 = vmatpush.msra.mxu0 %v629
    %660 = vmatpush.msra.mxu0 %v628
    %661 = vmatpush.msra.mxu0 %v627
    %662 = vmatmul.f32.gmra.mxu0 %v644
    %v663 = vpop.f32.mrf.mxu0
    %v664 = vadd.f32 %v645, %v663
    %665 = vdwg.mxu0
    %v666 = vtanh.pop %v664
    %667 = vst [vmem:[%s4] sm:$0xff] %v666
    // Predicated region
    $region30: #{seq_bid_lstm_forward.1} parent=1 // pred_check
      _
    $region31: #{seq_bid_lstm_forward.1} parent=1 // pred_check_branch
      %669 = sbr.rel (0) target = $region33
    $region32: #{seq_bid_lstm_forward.1} parent=1 // pred_region
      _
    $region33: #{seq_bid_lstm_forward.1} parent=1 // pred_fallthru
      _
    // Predicated region
    $region34: #{seq_bid_lstm_forward.1} parent=1 // pred_check
      _
    $region35: #{seq_bid_lstm_forward.1} parent=1 // pred_check_branch
      %671 = sbr.rel (0) target = $region37
    $region36: #{seq_bid_lstm_forward.1} parent=1 // pred_region
      _
    $region37: #{seq_bid_lstm_forward.1} parent=1 // pred_fallthru
      _
    %672 = vsyncpa [#allocation4], 1
    %673 = vsyncpa [#allocation6], 1

</llo_original>
